<compile_context>
chip_gen: v5e
topology: v5e:2x2
jax: 0.10.0
libtpu: 0.0.40
codegen_flags: <defaults>
</compile_context>

<pallas_src>
import functools

import jax
import jax.numpy as jnp
from jax.experimental import pallas as pl
from jax.experimental.pallas import tpu as pltpu


def _round_up(x, m):
    return ((x + m - 1) // m) * m


def _divisor_tile(total, cap):
    """Largest multiple of 128 <= cap that divides `total` (total % 128 == 0)."""
    t = max(128, (min(cap, total) // 128) * 128)
    while total % t:
        t -= 128
    return t


# ------------------------------- kernels ----------------------------------- #

def _proj_kernel(seq_ref, wT_ref, fts_ref, *, deg_col):
    # seq_fts = seq @ W.T, computed once, lane-dense.  Column `deg_col` of the
    # padded output is set to 1.0 so the aggregation matmul also accumulates
    # the row degree on the MXU.
    fts = jnp.dot(seq_ref[...], wT_ref[...], preferred_element_type=jnp.float32)
    col = jax.lax.broadcasted_iota(jnp.int32, fts.shape, 1)
    fts_ref[...] = jnp.where(col == deg_col, 1.0, fts).astype(fts_ref.dtype)


def _agg_kernel(adj_ref, fts_ref, out_ref, *, alpha, deg_col, tk, fts_resident):
    k = pl.program_id(1)

    @pl.when(k == 0)
    def _init():
        out_ref[...] = jnp.zeros_like(out_ref)

    if fts_resident:
        # seq_fts is fully resident in VMEM (fetched once); slice the k-th chunk.
        start = pl.multiple_of(k * tk, 128)
        fts = fts_ref[pl.ds(start, tk), :]
    else:
        fts = fts_ref[...]

    # adj streamed in native dtype; per-tile cast (hidden under the adj DMA).
    adj_blk = adj_ref[...].astype(fts.dtype)
    # Single MXU matmul accumulates both the features AND the row degree
    # (via the ones column of seq_fts) directly into the resident output block.
    out_ref[...] += jnp.dot(adj_blk, fts, preferred_element_type=jnp.float32)

    @pl.when(k == pl.num_programs(1) - 1)
    def _finalize():
        acc = out_ref[...]
        deg = acc[:, deg_col:deg_col + 1]                   # MXU-accumulated degree
        inv = pl.reciprocal(deg + 1e-8, approx=False)       # exact; kernel is mem-bound
        out = acc * inv
        # PReLU with a single shared, compile-time alpha.
        out_ref[...] = jnp.where(out > 0, out, alpha * out)


# ------------------------------- wrapper ------------------------------------ #

def mean_aggregator(seq, adj, weight, alpha, *, tm=1024, tk=2048, adj_is_binary=True):
    """seq: (N, in_dim) f32, adj: (N, N) dense, weight: (out_dim, in_dim), alpha: float.

    adj_is_binary=True streams adj through a per-tile bf16 cast (exact for 0/1
    masks); set False for weighted adjacencies to keep an exact f32 matmul path.
    """
    n, in_dim = seq.shape
    out_dim = weight.shape[0]
    # Lane-dense feature width + one extra column that carries the row degree.
    outp = _round_up(out_dim + 1, 128)
    deg_col = out_dim

    compute_dtype = jnp.bfloat16 if adj_is_binary else jnp.float32

    n128 = _round_up(n, 128)
    # Pad only when N is not 128-aligned: in the aligned case adj is handed to
    # the kernel in its native dtype with no extra N^2 HBM pass.
    if n128 != n:
        adj_p = jnp.pad(adj.astype(jnp.float32), ((0, n128 - n), (0, n128 - n)))
        seq_p = jnp.pad(seq.astype(jnp.float32), ((0, n128 - n), (0, 0)))
    else:
        adj_p = adj.astype(jnp.float32)
        seq_p = seq.astype(jnp.float32)
    wT_p = jnp.pad(weight.T.astype(jnp.float32), ((0, 0), (0, outp - out_dim)))

    # Tile selection: big tiles to amortize the ~0.35us per-grid-step overhead
    # (HBM-bound kernel), but keep >=2 row tiles so the "parallel" axis can be
    # sharded across both v7x TensorCores.
    cap_m = tm
    if n128 >= 256:
        cap_m = min(cap_m, n128 // 2)
    tm = _divisor_tile(n128, cap_m)
    tk = _divisor_tile(n128, tk)

    # ---- 1) projection: seq_fts = seq @ W.T (+ ones column), once ------------ #
    tp = _divisor_tile(n128, 2048)
    seq_fts = pl.pallas_call(
        functools.partial(_proj_kernel, deg_col=deg_col),
        out_shape=jax.ShapeDtypeStruct((n128, outp), compute_dtype),
        grid_spec=pltpu.PrefetchScalarGridSpec(
            num_scalar_prefetch=0,
            grid=(n128 // tp,),
            in_specs=[
                pl.BlockSpec((tp, in_dim), lambda i: (i, 0)),
                pl.BlockSpec((in_dim, outp), lambda i: (0, 0)),
            ],
            out_specs=pl.BlockSpec((tp, outp), lambda i: (i, 0)),
        ),
        compiler_params=pltpu.CompilerParams(dimension_semantics=("parallel",)),
    )(seq_p, wT_p)

    # seq_fts residency: fetch it once into VMEM when small (<=2 MiB/buffer),
    # otherwise tile it along the reduction axis (re-fetch amortized by tm).
    fts_bytes = n128 * outp * jnp.dtype(compute_dtype).itemsize
    fts_resident = fts_bytes <= (2 << 20)
    if fts_resident:
        fts_spec = pl.BlockSpec((n128, outp), lambda i, k: (0, 0))
    else:
        fts_spec = pl.BlockSpec((tk, outp), lambda i, k: (k, 0))

    # ---- 2) aggregation: out = PReLU((adj @ seq_fts) / (deg + eps)) ---------- #
    kernel = functools.partial(
        _agg_kernel, alpha=float(alpha), deg_col=deg_col, tk=tk,
        fts_resident=fts_resident)
    out_p = pl.pallas_call(
        kernel,
        out_shape=jax.ShapeDtypeStruct((n128, outp), jnp.float32),
        grid_spec=pltpu.PrefetchScalarGridSpec(
            num_scalar_prefetch=0,
            grid=(n128 // tm, n128 // tk),
            in_specs=[
                pl.BlockSpec((tm, tk), lambda i, k: (i, k)),   # streamed adj tile
                fts_spec,                                      # seq_fts (resident/tiled)
            ],
            # Output block is constant across k -> resident accumulator.
            out_specs=pl.BlockSpec((tm, outp), lambda i, k: (i, 0)),
        ),
        compiler_params=pltpu.CompilerParams(
            # Row axis shards across TensorCores; column axis is the reduction
            # carrying the resident output accumulator.
            dimension_semantics=("parallel", "arbitrary"),
            # Explicit limit so the large f32 adj tiles fit on v5e (16 MiB
            # default scoped VMEM) while matching v7x's 32 MiB scoped budget.
            vmem_limit_bytes=32 * 1024 * 1024,
        ),
    )(adj_p, seq_fts)

    return out_p[:n, :out_dim]


def _reference(seq, adj, weight, alpha):
    seq_fts = seq @ weight.T
    out = adj @ seq_fts
    deg = adj @ jnp.ones((adj.shape[0], 1), jnp.float32)
    out = out / (deg + 1e-8)
    return jnp.where(out > 0, out, alpha * out)


if __name__ == "__main__":
    # Small shapes consistent with the module: N nodes, in_dim -> out_dim.
    N, IN_DIM, OUT_DIM = 256, 64, 32

    key = jax.random.PRNGKey(0)
    k_seq, k_adj, k_w = jax.random.split(key, 3)

    seq = jax.random.normal(k_seq, (N, IN_DIM), dtype=jnp.float32)

    # Random sparse-ish 0/1 adjacency (dense representation of the spmm operand)
    # with self-loops so no row is empty.
    adj = (jax.random.uniform(k_adj, (N, N)) < 0.1).astype(jnp.float32)
    adj = jnp.maximum(adj, jnp.eye(N, dtype=jnp.float32))

    # Deterministic xavier_normal_ init with gain=1.414 for the Linear weight.
    gain = 1.414
    std = gain * (2.0 / (IN_DIM + OUT_DIM)) ** 0.5
    weight = std * jax.random.normal(k_w, (OUT_DIM, IN_DIM), dtype=jnp.float32)

    alpha = 0.25  # nn.PReLU default single-parameter init

    out = mean_aggregator(seq, adj, weight, alpha)
    out = jax.block_until_ready(out)

    ref = _reference(seq, adj, weight, alpha)
    assert out.shape == (N, OUT_DIM)
    # bf16 seq_fts / per-tile bf16 adj (exact for 0/1) dominate the error budget.
    assert jnp.allclose(out, ref, atol=3e-2, rtol=3e-2), "mismatch vs reference"

    print("KERNEL_OK")
</pallas_src>

<mosaic_0001>
module attributes {stable_mosaic.version = 11 : i64} {
  func.func @_proj_kernel(%arg0: i32, %arg1: memref<256x64xf32, #tpu.memory_space<vmem>>, %arg2: memref<64x128xf32, #tpu.memory_space<vmem>>, %arg3: memref<256x128xbf16, #tpu.memory_space<vmem>>) attributes {dimension_semantics = [#tpu.dimension_semantics<parallel>], iteration_bounds = array<i64: 1>, scalar_prefetch = 0 : i64, scratch_operands = 0 : i64, tpu.core_type = #tpu.core_type<tc>, window_params = [{transform_indices = @transform_0, window_bounds = array<i64: 256, 64>}, {pipeline_mode = #tpu.pipeline_mode<synchronous>, transform_indices = @transform_1, window_bounds = array<i64: 64, 128>}, {transform_indices = @transform_2, window_bounds = array<i64: 256, 128>}]} {
    %c0 = arith.constant 0 : index
    %c0_0 = arith.constant 0 : index
    %0 = vector.load %arg1[%c0, %c0_0] : memref<256x64xf32, #tpu.memory_space<vmem>>, vector<256x64xf32>
    %c0_1 = arith.constant 0 : index
    %c0_2 = arith.constant 0 : index
    %1 = vector.load %arg2[%c0_1, %c0_2] : memref<64x128xf32, #tpu.memory_space<vmem>>, vector<64x128xf32>
    %cst = arith.constant dense<0.000000e+00> : vector<256x128xf32>
    %2 = tpu.matmul %0, %1, %cst {dimension_numbers = #tpu.dot_dimension_numbers<[1], [0], [0], [1], [0, 0, 1, 1], [], []>} : vector<256x64xf32>, vector<64x128xf32>, vector<256x128xf32> -> vector<256x128xf32>
    %3 = tpu.iota {dimensions = array<i32: 1>} : vector<256x128xi32>
    %c32_i32 = arith.constant 32 : i32
    %4 = vector.broadcast %c32_i32 : i32 to vector<256x128xi32>
    %5 = arith.cmpi eq, %3, %4 : vector<256x128xi32>
    %cst_3 = arith.constant 1.000000e+00 : f32
    %6 = vector.broadcast %cst_3 : f32 to vector<256x128xf32>
    %7 = arith.select %5, %6, %2 : vector<256x128xi1>, vector<256x128xf32>
    %8 = arith.truncf %7 : vector<256x128xf32> to vector<256x128xbf16>
    %c0_4 = arith.constant 0 : index
    %c0_5 = arith.constant 0 : index
    %9 = vector.load %arg3[%c0_4, %c0_5] : memref<256x128xbf16, #tpu.memory_space<vmem>>, vector<256x128xbf16>
    tpu.vector_store %arg3[%c0_4, %c0_5], %8 {strides = array<i32>} : memref<256x128xbf16, #tpu.memory_space<vmem>>, vector<256x128xbf16>,
    return
  }
  func.func @transform_0(%arg0: i32) -> (i32, i32) {
    %c0_i32 = arith.constant 0 : i32
    %c0_i32_0 = arith.constant 0 : i32
    return %arg0, %c0_i32 : i32, i32
  }
  func.func @transform_1(%arg0: i32) -> (i32, i32) {
    %c0_i32 = arith.constant 0 : i32
    %c0_i32_0 = arith.constant 0 : i32
    %c0_i32_1 = arith.constant 0 : i32
    return %c0_i32, %c0_i32_0 : i32, i32
  }
  func.func @transform_2(%arg0: i32) -> (i32, i32) {
    %c0_i32 = arith.constant 0 : i32
    %c0_i32_0 = arith.constant 0 : i32
    return %arg0, %c0_i32 : i32, i32
  }
}

</mosaic_0001>

<llo_original>
// kernel: tpu_custom_call.1
$region0: #{tpu_custom_call.1}
  #allocation0 [shape = 'u32[]', space=smem, size = 0x4, offset = 0x4, fixed_abs, tag = 'smem constant byte address 0x4 - core index']
  #allocation1 [shape = 'u32[72,128]{1,0:T(1,128)}', space=vmem, size = 0x9000, scoped, tag = 'internal scratch']
  %s0 = inlined_call_operand.vmem [shape: f32[256,64], index: 0, kind: input, shape index: {}]
  %s1 = inlined_call_operand.vmem [shape: f32[64,128], index: 1, kind: input, shape index: {}]
  %s2 = inlined_call_operand.hbm [shape: bf16[256,128], index: 2, kind: output, shape index: {}]
  %s3 = sld [smem:[#allocation0]]
  $region18: #{tpu_custom_call.1} parent=0
    _
  %s5 = ssub.s32 1, %s3
  %s6 = scalar_select 0, %s5, %s3
  $region1: #{tpu_custom_call.1} parent=0
    #allocation2 [shape = 'u8[65536]{0}', space=vmem, size = 0x10000, scoped, tag = 'output window, operand 0, single buffered']
    #allocation3 [shape = 's32[1]{0}', space=sflag, size = 0x4, scoped, tag = 'scoped memory for tpu_custom_call.1']
    %7 = vsyncpa [#allocation3], 0
    // Predicated region
    $region2: #{tpu_custom_call.1} parent=1 // pred_check
      _
    $region3: #{tpu_custom_call.1} parent=1 // pred_check_branch
      %9 = sbr.rel (0) target = $region5
    $region4: #{tpu_custom_call.1} parent=1 // pred_region
      _
    $region5: #{tpu_custom_call.1} parent=1 // pred_fallthru
      _
    // Predicated region
    $region6: #{tpu_custom_call.1} parent=1 // pred_check
      _
    $region7: #{tpu_custom_call.1} parent=1 // pred_check_branch
      %11 = sbr.rel (0) target = $region9
    $region8: #{tpu_custom_call.1} parent=1 // pred_region
      _
    $region9: #{tpu_custom_call.1} parent=1 // pred_fallthru
      _
    %v12 = vld [vmem:[%s0] sm:$0xff]
    %v13 = vld [vmem:[%s0 + $0x8] sm:$0xff]
    %v14 = vld [vmem:[%s0 + $0x10] sm:$0xff]
    %v15 = vld [vmem:[%s0 + $0x18] sm:$0xff]
    %v16 = vld [vmem:[%s0 + $0x20] sm:$0xff]
    %v17 = vld [vmem:[%s0 + $0x28] sm:$0xff]
    %v18 = vld [vmem:[%s0 + $0x30] sm:$0xff]
    %v19 = vld [vmem:[%s0 + $0x38] sm:$0xff]
    %v20 = vld [vmem:[%s0 + $0x40] sm:$0xff]
    %v21 = vld [vmem:[%s0 + $0x48] sm:$0xff]
    %v22 = vld [vmem:[%s0 + $0x50] sm:$0xff]
    %v23 = vld [vmem:[%s0 + $0x58] sm:$0xff]
    %v24 = vld [vmem:[%s0 + $0x60] sm:$0xff]
    %v25 = vld [vmem:[%s0 + $0x68] sm:$0xff]
    %v26 = vld [vmem:[%s0 + $0x70] sm:$0xff]
    %v27 = vld [vmem:[%s0 + $0x78] sm:$0xff]
    %v28 = vld [vmem:[%s0 + $0x80] sm:$0xff]
    %v29 = vld [vmem:[%s0 + $0x88] sm:$0xff]
    %v30 = vld [vmem:[%s0 + $0x90] sm:$0xff]
    %v31 = vld [vmem:[%s0 + $0x98] sm:$0xff]
    %v32 = vld [vmem:[%s0 + $0xa0] sm:$0xff]
    %v33 = vld [vmem:[%s0 + $0xa8] sm:$0xff]
    %v34 = vld [vmem:[%s0 + $0xb0] sm:$0xff]
    %v35 = vld [vmem:[%s0 + $0xb8] sm:$0xff]
    %v36 = vld [vmem:[%s0 + $0xc0] sm:$0xff]
    %v37 = vld [vmem:[%s0 + $0xc8] sm:$0xff]
    %v38 = vld [vmem:[%s0 + $0xd0] sm:$0xff]
    %v39 = vld [vmem:[%s0 + $0xd8] sm:$0xff]
    %v40 = vld [vmem:[%s0 + $0xe0] sm:$0xff]
    %v41 = vld [vmem:[%s0 + $0xe8] sm:$0xff]
    %v42 = vld [vmem:[%s0 + $0xf0] sm:$0xff]
    %v43 = vld [vmem:[%s0 + $0xf8] sm:$0xff]
    %v44 = vld [vmem:[%s1] sm:$0xff]
    %v45 = vld [vmem:[%s1 + $0x8] sm:$0xff]
    %v46 = vld [vmem:[%s1 + $0x10] sm:$0xff]
    %v47 = vld [vmem:[%s1 + $0x18] sm:$0xff]
    %v48 = vld [vmem:[%s1 + $0x20] sm:$0xff]
    %v49 = vld [vmem:[%s1 + $0x28] sm:$0xff]
    %v50 = vld [vmem:[%s1 + $0x30] sm:$0xff]
    %v51 = vld [vmem:[%s1 + $0x38] sm:$0xff]
    %vm52 = vcmask 523264
    %v54 = vsel %vm52, %v12, 0
    %v57 = vsel %vm52, %v13, 0
    %v60 = vsel %vm52, %v14, 0
    %v63 = vsel %vm52, %v15, 0
    %v66 = vsel %vm52, %v16, 0
    %v69 = vsel %vm52, %v17, 0
    %v72 = vsel %vm52, %v18, 0
    %v75 = vsel %vm52, %v19, 0
    %v78 = vsel %vm52, %v20, 0
    %v81 = vsel %vm52, %v21, 0
    %v84 = vsel %vm52, %v22, 0
    %v87 = vsel %vm52, %v23, 0
    %v90 = vsel %vm52, %v24, 0
    %v93 = vsel %vm52, %v25, 0
    %v96 = vsel %vm52, %v26, 0
    %v99 = vsel %vm52, %v27, 0
    %v102 = vsel %vm52, %v28, 0
    %v105 = vsel %vm52, %v29, 0
    %v108 = vsel %vm52, %v30, 0
    %v111 = vsel %vm52, %v31, 0
    %v114 = vsel %vm52, %v32, 0
    %v117 = vsel %vm52, %v33, 0
    %v120 = vsel %vm52, %v34, 0
    %v123 = vsel %vm52, %v35, 0
    %v126 = vsel %vm52, %v36, 0
    %v129 = vsel %vm52, %v37, 0
    %v132 = vsel %vm52, %v38, 0
    %v135 = vsel %vm52, %v39, 0
    %v138 = vsel %vm52, %v40, 0
    %v141 = vsel %vm52, %v41, 0
    %v144 = vsel %vm52, %v42, 0
    %v147 = vsel %vm52, %v43, 0
    %149 = vmatpush.msra.mxu0 0.0
    %150 = vmatpush.msra.mxu0 0.0
    %151 = vmatpush.msra.mxu0 0.0
    %152 = vmatpush.msra.mxu0 0.0
    %153 = vmatpush.msra.mxu0 0.0
    %154 = vmatpush.msra.mxu0 0.0
    %155 = vmatpush.msra.mxu0 0.0
    %156 = vmatpush.msra.mxu0 0.0
    %157 = vmatpush.msra.mxu0 %v51
    %158 = vmatpush.msra.mxu0 %v50
    %159 = vmatpush.msra.mxu0 %v49
    %160 = vmatpush.msra.mxu0 %v48
    %161 = vmatpush.msra.mxu0 %v47
    %162 = vmatpush.msra.mxu0 %v46
    %163 = vmatpush.msra.mxu0 %v45
    %164 = vmatpush.msra.mxu0 %v44
    %165 = vmatmul.f32.gmra.mxu0 %v54
    %v166 = vpop.f32.mrf.mxu0
    %v167 = vadd.f32 0.0, %v166
    %168 = vmatmul.f32.gmra.mxu0 %v57
    %v169 = vpop.f32.mrf.mxu0
    %v170 = vadd.f32 0.0, %v169
    %171 = vmatmul.f32.gmra.mxu0 %v60
    %v172 = vpop.f32.mrf.mxu0
    %v173 = vadd.f32 0.0, %v172
    %174 = vmatmul.f32.gmra.mxu0 %v63
    %v175 = vpop.f32.mrf.mxu0
    %v176 = vadd.f32 0.0, %v175
    %177 = vmatmul.f32.gmra.mxu0 %v66
    %v178 = vpop.f32.mrf.mxu0
    %v179 = vadd.f32 0.0, %v178
    %180 = vmatmul.f32.gmra.mxu0 %v69
    %v181 = vpop.f32.mrf.mxu0
    %v182 = vadd.f32 0.0, %v181
    %183 = vmatmul.f32.gmra.mxu0 %v72
    %v184 = vpop.f32.mrf.mxu0
    %v185 = vadd.f32 0.0, %v184
    %186 = vmatmul.f32.gmra.mxu0 %v75
    %v187 = vpop.f32.mrf.mxu0
    %v188 = vadd.f32 0.0, %v187
    %189 = vmatmul.f32.gmra.mxu0 %v78
    %v190 = vpop.f32.mrf.mxu0
    %v191 = vadd.f32 0.0, %v190
    %192 = vmatmul.f32.gmra.mxu0 %v81
    %v193 = vpop.f32.mrf.mxu0
    %v194 = vadd.f32 0.0, %v193
    %195 = vmatmul.f32.gmra.mxu0 %v84
    %v196 = vpop.f32.mrf.mxu0
    %v197 = vadd.f32 0.0, %v196
    %198 = vmatmul.f32.gmra.mxu0 %v87
    %v199 = vpop.f32.mrf.mxu0
    %v200 = vadd.f32 0.0, %v199
    %201 = vmatmul.f32.gmra.mxu0 %v90
    %v202 = vpop.f32.mrf.mxu0
    %v203 = vadd.f32 0.0, %v202
    %204 = vmatmul.f32.gmra.mxu0 %v93
    %v205 = vpop.f32.mrf.mxu0
    %v206 = vadd.f32 0.0, %v205
    %207 = vmatmul.f32.gmra.mxu0 %v96
    %v208 = vpop.f32.mrf.mxu0
    %v209 = vadd.f32 0.0, %v208
    %210 = vmatmul.f32.gmra.mxu0 %v99
    %v211 = vpop.f32.mrf.mxu0
    %v212 = vadd.f32 0.0, %v211
    %213 = vmatmul.f32.gmra.mxu0 %v102
    %v214 = vpop.f32.mrf.mxu0
    %v215 = vadd.f32 0.0, %v214
    %216 = vmatmul.f32.gmra.mxu0 %v105
    %v217 = vpop.f32.mrf.mxu0
    %v218 = vadd.f32 0.0, %v217
    %219 = vmatmul.f32.gmra.mxu0 %v108
    %v220 = vpop.f32.mrf.mxu0
    %v221 = vadd.f32 0.0, %v220
    %222 = vmatmul.f32.gmra.mxu0 %v111
    %v223 = vpop.f32.mrf.mxu0
    %v224 = vadd.f32 0.0, %v223
    %225 = vmatmul.f32.gmra.mxu0 %v114
    %v226 = vpop.f32.mrf.mxu0
    %v227 = vadd.f32 0.0, %v226
    %228 = vmatmul.f32.gmra.mxu0 %v117
    %v229 = vpop.f32.mrf.mxu0
    %v230 = vadd.f32 0.0, %v229
    %231 = vmatmul.f32.gmra.mxu0 %v120
    %v232 = vpop.f32.mrf.mxu0
    %v233 = vadd.f32 0.0, %v232
    %234 = vmatmul.f32.gmra.mxu0 %v123
    %v235 = vpop.f32.mrf.mxu0
    %v236 = vadd.f32 0.0, %v235
    %237 = vmatmul.f32.gmra.mxu0 %v126
    %v238 = vpop.f32.mrf.mxu0
    %v239 = vadd.f32 0.0, %v238
    %240 = vmatmul.f32.gmra.mxu0 %v129
    %v241 = vpop.f32.mrf.mxu0
    %v242 = vadd.f32 0.0, %v241
    %243 = vmatmul.f32.gmra.mxu0 %v132
    %v244 = vpop.f32.mrf.mxu0
    %v245 = vadd.f32 0.0, %v244
    %246 = vmatmul.f32.gmra.mxu0 %v135
    %v247 = vpop.f32.mrf.mxu0
    %v248 = vadd.f32 0.0, %v247
    %249 = vmatmul.f32.gmra.mxu0 %v138
    %v250 = vpop.f32.mrf.mxu0
    %v251 = vadd.f32 0.0, %v250
    %252 = vmatmul.f32.gmra.mxu0 %v141
    %v253 = vpop.f32.mrf.mxu0
    %v254 = vadd.f32 0.0, %v253
    %255 = vmatmul.f32.gmra.mxu0 %v144
    %v256 = vpop.f32.mrf.mxu0
    %v257 = vadd.f32 0.0, %v256
    %258 = vmatmul.f32.gmra.mxu0 %v147
    %v259 = vpop.f32.mrf.mxu0
    %v260 = vadd.f32 0.0, %v259
    %261 = vdwg.mxu0
    %v262 = vlaneseq
    %v263 = vand.u32 %v262, 127
    %vm264 = vcmp.eq.s32.totalorder %v263, 32
    %v265 = vsel %vm264, 1.0, %v167
    %v266 = vsel %vm264, 1.0, %v170
    %v267 = vsel %vm264, 1.0, %v173
    %v268 = vsel %vm264, 1.0, %v176
    %v269 = vsel %vm264, 1.0, %v179
    %v270 = vsel %vm264, 1.0, %v182
    %v271 = vsel %vm264, 1.0, %v185
    %v272 = vsel %vm264, 1.0, %v188
    %v273 = vsel %vm264, 1.0, %v191
    %v274 = vsel %vm264, 1.0, %v194
    %v275 = vsel %vm264, 1.0, %v197
    %v276 = vsel %vm264, 1.0, %v200
    %v277 = vsel %vm264, 1.0, %v203
    %v278 = vsel %vm264, 1.0, %v206
    %v279 = vsel %vm264, 1.0, %v209
    %v280 = vsel %vm264, 1.0, %v212
    %v281 = vsel %vm264, 1.0, %v215
    %v282 = vsel %vm264, 1.0, %v218
    %v283 = vsel %vm264, 1.0, %v221
    %v284 = vsel %vm264, 1.0, %v224
    %v285 = vsel %vm264, 1.0, %v227
    %v286 = vsel %vm264, 1.0, %v230
    %v287 = vsel %vm264, 1.0, %v233
    %v288 = vsel %vm264, 1.0, %v236
    %v289 = vsel %vm264, 1.0, %v239
    %v290 = vsel %vm264, 1.0, %v242
    %v291 = vsel %vm264, 1.0, %v245
    %v292 = vsel %vm264, 1.0, %v248
    %v293 = vsel %vm264, 1.0, %v251
    %v294 = vsel %vm264, 1.0, %v254
    %v295 = vsel %vm264, 1.0, %v257
    %v296 = vsel %vm264, 1.0, %v260
    %v297 = vpack.c.bf16 %v265, %v265
    %v298 = vpack.c.bf16 %v266, %v266
    %v299 = vpack.c.bf16 %v267, %v267
    %v300 = vpack.c.bf16 %v268, %v268
    %v301 = vpack.c.bf16 %v269, %v269
    %v302 = vpack.c.bf16 %v270, %v270
    %v303 = vpack.c.bf16 %v271, %v271
    %v304 = vpack.c.bf16 %v272, %v272
    %v305 = vpack.c.bf16 %v273, %v273
    %v306 = vpack.c.bf16 %v274, %v274
    %v307 = vpack.c.bf16 %v275, %v275
    %v308 = vpack.c.bf16 %v276, %v276
    %v309 = vpack.c.bf16 %v277, %v277
    %v310 = vpack.c.bf16 %v278, %v278
    %v311 = vpack.c.bf16 %v279, %v279
    %v312 = vpack.c.bf16 %v280, %v280
    %v313 = vpack.c.bf16 %v281, %v281
    %v314 = vpack.c.bf16 %v282, %v282
    %v315 = vpack.c.bf16 %v283, %v283
    %v316 = vpack.c.bf16 %v284, %v284
    %v317 = vpack.c.bf16 %v285, %v285
    %v318 = vpack.c.bf16 %v286, %v286
    %v319 = vpack.c.bf16 %v287, %v287
    %v320 = vpack.c.bf16 %v288, %v288
    %v321 = vpack.c.bf16 %v289, %v289
    %v322 = vpack.c.bf16 %v290, %v290
    %v323 = vpack.c.bf16 %v291, %v291
    %v324 = vpack.c.bf16 %v292, %v292
    %v325 = vpack.c.bf16 %v293, %v293
    %v326 = vpack.c.bf16 %v294, %v294
    %v327 = vpack.c.bf16 %v295, %v295
    %v328 = vpack.c.bf16 %v296, %v296
    %329 = vst [vmem:[#allocation2] sm:$0xf] %v297
    %330 = vst [vmem:[#allocation2 + $0x4] sm:$0xf] %v298
    %331 = vst [vmem:[#allocation2 + $0x8] sm:$0xf] %v299
    %332 = vst [vmem:[#allocation2 + $0xc] sm:$0xf] %v300
    %333 = vst [vmem:[#allocation2 + $0x10] sm:$0xf] %v301
    %334 = vst [vmem:[#allocation2 + $0x14] sm:$0xf] %v302
    %335 = vst [vmem:[#allocation2 + $0x18] sm:$0xf] %v303
    %336 = vst [vmem:[#allocation2 + $0x1c] sm:$0xf] %v304
    %337 = vst [vmem:[#allocation2 + $0x20] sm:$0xf] %v305
    %338 = vst [vmem:[#allocation2 + $0x24] sm:$0xf] %v306
    %339 = vst [vmem:[#allocation2 + $0x28] sm:$0xf] %v307
    %340 = vst [vmem:[#allocation2 + $0x2c] sm:$0xf] %v308
    %341 = vst [vmem:[#allocation2 + $0x30] sm:$0xf] %v309
    %342 = vst [vmem:[#allocation2 + $0x34] sm:$0xf] %v310
    %343 = vst [vmem:[#allocation2 + $0x38] sm:$0xf] %v311
    %344 = vst [vmem:[#allocation2 + $0x3c] sm:$0xf] %v312
    %345 = vst [vmem:[#allocation2 + $0x40] sm:$0xf] %v313
    %346 = vst [vmem:[#allocation2 + $0x44] sm:$0xf] %v314
    %347 = vst [vmem:[#allocation2 + $0x48] sm:$0xf] %v315
    %348 = vst [vmem:[#allocation2 + $0x4c] sm:$0xf] %v316
    %349 = vst [vmem:[#allocation2 + $0x50] sm:$0xf] %v317
    %350 = vst [vmem:[#allocation2 + $0x54] sm:$0xf] %v318
    %351 = vst [vmem:[#allocation2 + $0x58] sm:$0xf] %v319
    %352 = vst [vmem:[#allocation2 + $0x5c] sm:$0xf] %v320
    %353 = vst [vmem:[#allocation2 + $0x60] sm:$0xf] %v321
    %354 = vst [vmem:[#allocation2 + $0x64] sm:$0xf] %v322
    %355 = vst [vmem:[#allocation2 + $0x68] sm:$0xf] %v323
    %356 = vst [vmem:[#allocation2 + $0x6c] sm:$0xf] %v324
    %357 = vst [vmem:[#allocation2 + $0x70] sm:$0xf] %v325
    %358 = vst [vmem:[#allocation2 + $0x74] sm:$0xf] %v326
    %359 = vst [vmem:[#allocation2 + $0x78] sm:$0xf] %v327
    %360 = vst [vmem:[#allocation2 + $0x7c] sm:$0xf] %v328
    // Predicated region
    $region10: #{tpu_custom_call.1} parent=1 // pred_check
      _
    $region11: #{tpu_custom_call.1} parent=1 // pred_check_branch
      %362 = sbr.rel (0) target = $region13
    $region12: #{tpu_custom_call.1} parent=1 // pred_region
      %364 = vsyncadd [#allocation3], 0
      %s365 = sshll.u32 [#allocation2], 4
      %s366 = int_to_ptr.vmem [resolvable:$true] %s365
      %s367 = sshll.u32 %s2, 4
      %s368 = int_to_ptr.hbm [resolvable:$true] %s367
      %373 = dma.vmem_to_hbm [thread:$0]  %s366, 2048, %s368, [#allocation3], 64, 64, 4
    $region13: #{tpu_custom_call.1} parent=1 // pred_fallthru
      _
    // Predicated region
    $region14: #{tpu_custom_call.1} parent=1 // pred_check
      _
    $region15: #{tpu_custom_call.1} parent=1 // pred_check_branch
      %375 = sbr.rel (0) target = $region17
    $region16: #{tpu_custom_call.1} parent=1 // pred_region
      %377 = dma.done [#allocation3], 2048
    $region17: #{tpu_custom_call.1} parent=1 // pred_fallthru
      _
    %378 = vsyncpa [#allocation3], 1

</llo_original>
